<compile_context>
chip_gen: v6e
topology: v6e:2x2x1
jax: 0.10.0
libtpu: 0.0.40
codegen_flags: <defaults>
</compile_context>

<pallas_src>
import functools

import jax
import jax.numpy as jnp
from jax.experimental import pallas as pl
from jax.experimental.pallas import tpu as pltpu


def _round_up(v, m):
    return ((v + m - 1) // m) * m


def _vq_kernel(latent_ref, emb_ref, esqh_ref, xq_ref, idx_ref, sse_ref,
               *, n_valid, n_e, cross_dtype):
    """One N-tile of nearest-neighbour vector quantization.

    latent_ref: (TN, D)    input tile (x.dtype; last block may be ragged)
    emb_ref:    (K, D)     full codebook in f32, VMEM-resident (constant map)
    esqh_ref:   (1, K)     precomputed 0.5 * sum(e**2, -1)
    xq_ref:     (TN, D)    quantized output tile, stored in x.dtype
    idx_ref:    (1, 1, TN) lane-dense nearest-code indices for this tile
    sse_ref:    (1, 1, 1)  per-tile partial sum of squared error (masked)
    """
    tile = pl.program_id(0)
    latent = latent_ref[...].astype(jnp.float32)            # (TN, D)
    emb = emb_ref[...]                                       # (K, D) f32
    e_sq_half = esqh_ref[...]                                # (1, K) f32

    # argmin_k ||x_n - e_k||^2 == argmin_k (0.5*||e_k||^2 - <x_n, e_k>)
    # (per-row ||x_n||^2 and the positive scale 2 cannot change the argmin).
    # The cross matmul runs in bf16 on the MXU with f32 accumulation.
    cross = jax.lax.dot_general(                              # (TN, K)
        latent.astype(cross_dtype), emb.astype(cross_dtype),
        (((1,), (1,)), ((), ())),
        preferred_element_type=jnp.float32)
    d = e_sq_half - cross                                     # (TN, K)

    # First-index argmin along K (torch.argmin semantics).
    tn = d.shape[0]
    iota_k = jax.lax.broadcasted_iota(jnp.int32, d.shape, 1)        # (TN, K)
    min_d = jnp.min(d, axis=-1, keepdims=True)                      # (TN, 1)
    idx = jnp.min(jnp.where(d == min_d, iota_k, n_e), axis=-1)      # (TN,)
    idx = jnp.minimum(idx, n_e - 1)   # NaN / garbage-row guard (ragged tail)

    # Gather codebook rows with an exact one-hot f32 matmul (MXU-friendly).
    onehot = (iota_k == idx[:, None]).astype(jnp.float32)           # (TN, K)
    xq = jnp.dot(onehot, emb, preferred_element_type=jnp.float32)   # (TN, D)

    xq_ref[...] = xq.astype(xq_ref.dtype)                           # x.dtype
    idx_ref[...] = idx[None, None, :].astype(jnp.int32)             # lane-dense

    # Masked per-tile SSE partial. Rows >= n_valid belong to the ragged last
    # block and may contain arbitrary (even non-finite) values: use a NaN-safe
    # where-select rather than a multiply-by-zero mask.
    row_ids = tile * tn + jax.lax.broadcasted_iota(jnp.int32, (tn, 1), 0)
    valid = row_ids < n_valid                                        # (TN, 1)
    diff = jnp.where(valid, xq - latent, 0.0)
    sse_ref[...] = jnp.sum(diff * diff).reshape(1, 1, 1)


def vector_quantizer_forward(x, embedding, mu=0.25, tile_n=2048,
                             cross_dtype=jnp.bfloat16):
    """Pallas implementation of VectorQuantizer.forward (use_sk=False, idx != -1).

    Returns (x_q, loss, indices) matching the PyTorch forward values.
    """
    orig_shape = x.shape
    n_e, e_dim = embedding.shape
    latent = x.reshape(-1, e_dim)
    N = latent.shape[0]

    # Tile N without any wrapper-side padding: grid = cdiv(N, TN), the ragged
    # last block is masked in-kernel and its OOB output rows are dropped by
    # Pallas's masked writeback. TN is a multiple of 8 (sublane rule).
    TN = min(_round_up(int(tile_n), 8), _round_up(N, 8))
    num_tiles = pl.cdiv(N, TN)
    # v7x has two TensorCores; with dimension_semantics=("parallel",) the
    # N-grid is sharded across them, so prefer an even tile count (>= 2) when
    # there is enough work to split without making tiles tiny.
    if num_tiles % 2 == 1 and N >= 2 * 512:
        TN = min(TN, _round_up(pl.cdiv(N, num_tiles + 1), 8))
        num_tiles = pl.cdiv(N, TN)

    emb_f32 = embedding.astype(jnp.float32)
    # Hoisted codebook row norms with the factor 2 folded in (see kernel).
    e_sq_half = 0.5 * jnp.sum(emb_f32 * emb_f32, axis=1, keepdims=True).T  # (1, n_e)

    kernel = functools.partial(_vq_kernel, n_valid=N, n_e=n_e,
                               cross_dtype=cross_dtype)

    xq_flat, idx_tiles, sse_part = pl.pallas_call(
        kernel,
        out_shape=(
            jax.ShapeDtypeStruct((N, e_dim), x.dtype),            # x_q (x.dtype)
            jax.ShapeDtypeStruct((num_tiles, 1, TN), jnp.int32),  # indices
            jax.ShapeDtypeStruct((num_tiles, 1, 1), jnp.float32), # SSE partials
        ),
        grid=(num_tiles,),
        in_specs=[
            pl.BlockSpec((TN, e_dim), lambda i: (i, 0)),    # latent tile (ragged tail ok)
            pl.BlockSpec((n_e, e_dim), lambda i: (0, 0)),   # codebook (VMEM-resident)
            pl.BlockSpec((1, n_e), lambda i: (0, 0)),       # 0.5*||e||^2 (resident)
        ],
        out_specs=(
            pl.BlockSpec((TN, e_dim), lambda i: (i, 0)),    # x_q tile
            pl.BlockSpec((1, 1, TN), lambda i: (i, 0, 0)),  # indices (lane-dense)
            pl.BlockSpec((1, 1, 1), lambda i: (i, 0, 0)),   # SSE partial
        ),
        compiler_params=pltpu.CompilerParams(
            dimension_semantics=("parallel",),
            vmem_limit_bytes=48 * 1024 * 1024),
    )(latent, emb_f32, e_sq_half)

    mse = jnp.sum(sse_part) / jnp.float32(N * e_dim)
    # codebook_loss + mu * commitment_loss; both equal mse in forward value
    loss = mse + mu * mse

    x_q = xq_flat.reshape(orig_shape)
    # straight-through estimator: forward value == x_q
    x_q = x + jax.lax.stop_gradient(x_q.astype(x.dtype) - x)
    indices = idx_tiles.reshape(-1)[:N].reshape(orig_shape[:-1])
    return x_q, loss, indices


if __name__ == "__main__":
    # Module hyperparameters (small, consistent with the module's __init__)
    n_e, e_dim, mu = 256, 32, 0.25

    key = jax.random.PRNGKey(0)
    k_emb, k_x = jax.random.split(key)

    # embedding.weight.data.uniform_(-1/n_e, 1/n_e), deterministic
    embedding = jax.random.uniform(
        k_emb, (n_e, e_dim), dtype=jnp.float32,
        minval=-1.0 / n_e, maxval=1.0 / n_e)

    # x has last dim == e_dim (channels-last layout); N = 96 tokens.
    x = jax.random.normal(k_x, (2, 6, 8, e_dim), dtype=jnp.float32)

    # Pure-JAX f32 reference distances (same math as the PyTorch forward).
    latent = x.reshape(-1, e_dim)
    d_f32 = (jnp.sum(latent ** 2, axis=1, keepdims=True)
             + jnp.sum(embedding ** 2, axis=1, keepdims=True).T
             - 2.0 * latent @ embedding.T)
    best_d = jnp.min(d_f32, axis=-1)

    # tile_n=64 exercises the multi-tile + ragged-tail path (N=96 -> 2 tiles,
    # 32 out-of-bounds rows in the last block); the default exercises one tile.
    for tn in (64, 2048):
        x_q, loss, indices = vector_quantizer_forward(x, embedding, mu=mu, tile_n=tn)
        jax.block_until_ready((x_q, loss, indices))

        assert indices.shape == x.shape[:-1]
        idx_flat = indices.reshape(-1)
        assert bool(((idx_flat >= 0) & (idx_flat < n_e)).all())

        # The bf16 distance matmul may break near-ties differently from the
        # f32 reference; assert the chosen code is (near-)optimal in f32.
        chosen_d = jnp.take_along_axis(d_f32, idx_flat[:, None], axis=1)[:, 0]
        assert bool((chosen_d <= best_d + 1e-2).all())

        # x_q forward value must be the gathered codebook rows (straight-through).
        xq_ref = embedding[idx_flat].reshape(x.shape)
        assert jnp.allclose(x_q, xq_ref, atol=3e-5, rtol=1e-5)

        # loss must equal (1 + mu) * mse computed from the kernel's own indices.
        mse_ref = jnp.mean((xq_ref - x) ** 2)
        assert jnp.allclose(loss, mse_ref + mu * mse_ref, atol=1e-6, rtol=1e-4)

    print("KERNEL_OK")
</pallas_src>

<mosaic_0001>
module attributes {stable_mosaic.version = 11 : i64} {
  func.func @_vq_kernel(%arg0: i32, %arg1: memref<64x32xf32, #tpu.memory_space<vmem>>, %arg2: memref<256x32xf32, #tpu.memory_space<vmem>>, %arg3: memref<1x256xf32, #tpu.memory_space<vmem>>, %arg4: memref<64x32xf32, #tpu.memory_space<vmem>>, %arg5: memref<1x1x64xi32, #tpu.memory_space<vmem>>, %arg6: memref<1x1x1xf32, #tpu.memory_space<vmem>>) attributes {dimension_semantics = [#tpu.dimension_semantics<parallel>], iteration_bounds = array<i64: 2>, scalar_prefetch = 0 : i64, scratch_operands = 0 : i64, tpu.core_type = #tpu.core_type<tc>, window_params = [{transform_indices = @transform_0, window_bounds = array<i64: 64, 32>}, {pipeline_mode = #tpu.pipeline_mode<synchronous>, transform_indices = @transform_1, window_bounds = array<i64: 256, 32>}, {pipeline_mode = #tpu.pipeline_mode<synchronous>, transform_indices = @transform_2, window_bounds = array<i64: 1, 256>}, {transform_indices = @transform_3, window_bounds = array<i64: 64, 32>}, {transform_indices = @transform_4, window_bounds = array<i64: 1, 1, 64>}, {transform_indices = @transform_5, window_bounds = array<i64: 1, 1, 1>}]} {
    %c0 = arith.constant 0 : index
    %c0_0 = arith.constant 0 : index
    %0 = vector.load %arg1[%c0, %c0_0] : memref<64x32xf32, #tpu.memory_space<vmem>>, vector<64x32xf32>
    %c0_1 = arith.constant 0 : index
    %c0_2 = arith.constant 0 : index
    %1 = vector.load %arg2[%c0_1, %c0_2] : memref<256x32xf32, #tpu.memory_space<vmem>>, vector<256x32xf32>
    %c0_3 = arith.constant 0 : index
    %c0_4 = arith.constant 0 : index
    %2 = vector.load %arg3[%c0_3, %c0_4] : memref<1x256xf32, #tpu.memory_space<vmem>>, vector<1x256xf32>
    %3 = arith.truncf %0 : vector<64x32xf32> to vector<64x32xbf16>
    %4 = arith.truncf %1 : vector<256x32xf32> to vector<256x32xbf16>
    %cst = arith.constant dense<0.000000e+00> : vector<64x256xf32>
    %5 = tpu.matmul %3, %4, %cst {dimension_numbers = #tpu.dot_dimension_numbers<[1], [1], [0], [0], [0, 0, 1, 0], [], []>} : vector<64x32xbf16>, vector<256x32xbf16>, vector<64x256xf32> -> vector<64x256xf32>
    %6 = vector.broadcast %2 : vector<1x256xf32> to vector<64x256xf32>
    %7 = arith.subf %6, %5 : vector<64x256xf32>
    %8 = tpu.iota {dimensions = array<i32: 1>} : vector<64x256xi32>
    %cst_5 = arith.constant dense<0x7F800000> : vector<64xf32>
    %9 = vector.multi_reduction <minimumf>, %7, %cst_5 [1] : vector<64x256xf32> to vector<64xf32>
    %10 = vector.shape_cast %9 : vector<64xf32> to vector<64x1xf32>
    %11 = vector.broadcast %10 : vector<64x1xf32> to vector<64x256xf32>
    %12 = arith.cmpf oeq, %7, %11 : vector<64x256xf32>
    %c256_i32 = arith.constant 256 : i32
    %13 = vector.broadcast %c256_i32 : i32 to vector<64x256xi32>
    %14 = arith.select %12, %8, %13 : vector<64x256xi1>, vector<64x256xi32>
    %cst_6 = arith.constant dense<2147483647> : vector<64xi32>
    %15 = vector.multi_reduction <minsi>, %14, %cst_6 [1] : vector<64x256xi32> to vector<64xi32>
    %c255_i32 = arith.constant 255 : i32
    %16 = vector.broadcast %c255_i32 : i32 to vector<64xi32>
    %17 = arith.minsi %15, %16 : vector<64xi32>
    %18 = vector.shape_cast %17 : vector<64xi32> to vector<64x1xi32>
    %19 = vector.broadcast %18 : vector<64x1xi32> to vector<64x256xi32>
    %20 = arith.cmpi eq, %8, %19 : vector<64x256xi32>
    %21 = arith.extui %20 : vector<64x256xi1> to vector<64x256xi32>
    %22 = arith.sitofp %21 : vector<64x256xi32> to vector<64x256xf32>
    %cst_7 = arith.constant dense<0.000000e+00> : vector<64x32xf32>
    %23 = tpu.matmul %22, %1, %cst_7 {dimension_numbers = #tpu.dot_dimension_numbers<[1], [0], [0], [1], [0, 0, 1, 1], [], []>} : vector<64x256xf32>, vector<256x32xf32>, vector<64x32xf32> -> vector<64x32xf32>
    %c0_8 = arith.constant 0 : index
    %c0_9 = arith.constant 0 : index
    %24 = vector.load %arg4[%c0_8, %c0_9] : memref<64x32xf32, #tpu.memory_space<vmem>>, vector<64x32xf32>
    tpu.vector_store %arg4[%c0_8, %c0_9], %23 {strides = array<i32>} : memref<64x32xf32, #tpu.memory_space<vmem>>, vector<64x32xf32>,
    %25 = vector.shape_cast %17 : vector<64xi32> to vector<1x1x64xi32>
    %c0_10 = arith.constant 0 : index
    %c0_11 = arith.constant 0 : index
    %c0_12 = arith.constant 0 : index
    %26 = vector.load %arg5[%c0_10, %c0_11, %c0_12] : memref<1x1x64xi32, #tpu.memory_space<vmem>>, vector<1x1x64xi32>
    tpu.vector_store %arg5[%c0_10, %c0_11, %c0_12], %25 {strides = array<i32>} : memref<1x1x64xi32, #tpu.memory_space<vmem>>, vector<1x1x64xi32>,
    %c64_i32 = arith.constant 64 : i32
    %27 = arith.muli %arg0, %c64_i32 : i32
    %28 = tpu.iota {dimensions = array<i32: 0>} : vector<64x1xi32>
    %29 = vector.broadcast %27 : i32 to vector<64x1xi32>
    %30 = arith.addi %29, %28 : vector<64x1xi32>
    %c96_i32 = arith.constant 96 : i32
    %31 = vector.broadcast %c96_i32 : i32 to vector<64x1xi32>
    %32 = arith.cmpi slt, %30, %31 : vector<64x1xi32>
    %33 = arith.subf %23, %0 : vector<64x32xf32>
    %cst_13 = arith.constant 0.000000e+00 : f32
    %34 = vector.shape_cast %32 : vector<64x1xi1> to vector<64x1xi1>
    %35 = vector.broadcast %34 : vector<64x1xi1> to vector<64x32xi1>
    %36 = vector.broadcast %cst_13 : f32 to vector<64x32xf32>
    %37 = arith.select %35, %33, %36 : vector<64x32xi1>, vector<64x32xf32>
    %38 = arith.mulf %37, %37 : vector<64x32xf32>
    %39 = vector.shape_cast %38 : vector<64x32xf32> to vector<1x64x32xf32>
    %cst_14 = arith.constant dense<0.000000e+00> : vector<1xf32>
    %40 = vector.multi_reduction <add>, %39, %cst_14 [1, 2] : vector<1x64x32xf32> to vector<1xf32>
    %41 = vector.shape_cast %40 : vector<1xf32> to vector<1x1x1xf32>
    %42 = vector.extract %41[0, 0, 0] : f32 from vector<1x1x1xf32>
    %43 = vector.broadcast %42 : f32 to vector<1x1x1xf32>
    %c0_15 = arith.constant 0 : index
    %c0_16 = arith.constant 0 : index
    %c0_17 = arith.constant 0 : index
    %44 = vector.load %arg6[%c0_15, %c0_16, %c0_17] : memref<1x1x1xf32, #tpu.memory_space<vmem>>, vector<1x1x1xf32>
    tpu.vector_store %arg6[%c0_15, %c0_16, %c0_17], %43 {strides = array<i32>} : memref<1x1x1xf32, #tpu.memory_space<vmem>>, vector<1x1x1xf32>,
    return
  }
  func.func @transform_0(%arg0: i32) -> (i32, i32) {
    %c0_i32 = arith.constant 0 : i32
    %c0_i32_0 = arith.constant 0 : i32
    return %arg0, %c0_i32 : i32, i32
  }
  func.func @transform_1(%arg0: i32) -> (i32, i32) {
    %c0_i32 = arith.constant 0 : i32
    %c0_i32_0 = arith.constant 0 : i32
    %c0_i32_1 = arith.constant 0 : i32
    return %c0_i32, %c0_i32_0 : i32, i32
  }
  func.func @transform_2(%arg0: i32) -> (i32, i32) {
    %c0_i32 = arith.constant 0 : i32
    %c0_i32_0 = arith.constant 0 : i32
    %c0_i32_1 = arith.constant 0 : i32
    return %c0_i32, %c0_i32_0 : i32, i32
  }
  func.func @transform_3(%arg0: i32) -> (i32, i32) {
    %c0_i32 = arith.constant 0 : i32
    %c0_i32_0 = arith.constant 0 : i32
    return %arg0, %c0_i32 : i32, i32
  }
  func.func @transform_4(%arg0: i32) -> (i32, i32, i32) {
    %c0_i32 = arith.constant 0 : i32
    %c0_i32_0 = arith.constant 0 : i32
    %c0_i32_1 = arith.constant 0 : i32
    return %arg0, %c0_i32, %c0_i32_0 : i32, i32, i32
  }
  func.func @transform_5(%arg0: i32) -> (i32, i32, i32) {
    %c0_i32 = arith.constant 0 : i32
    %c0_i32_0 = arith.constant 0 : i32
    %c0_i32_1 = arith.constant 0 : i32
    return %arg0, %c0_i32, %c0_i32_0 : i32, i32, i32
  }
}

</mosaic_0001>

<llo_original>
// kernel: tpu_custom_call.1
$region0: #{tpu_custom_call.1}
  #allocation0 [shape = 'u32[]', space=smem, size = 0x4, offset = 0x4, fixed_abs, tag = 'smem constant byte address 0x4 - core index']
  #allocation1 [shape = 'u32[144,128]{1,0:T(1,128)}', space=vmem, size = 0x12000, scoped, tag = 'internal scratch']
  %s0 = inlined_call_operand.vmem [shape: f32[96,32], index: 0, kind: input, shape index: {}]
  %s1 = inlined_call_operand.vmem [shape: f32[256,32], index: 1, kind: input, shape index: {}]
  %s2 = inlined_call_operand.vmem [shape: f32[1,256], index: 2, kind: input, shape index: {}]
  %s3 = inlined_call_operand.vmem [shape: f32[96,32], index: 3, kind: output, shape index: {0}]
  %s4 = inlined_call_operand.hbm [shape: s32[2,1,64], index: 4, kind: output, shape index: {1}]
  %s5 = inlined_call_operand.vmem [shape: f32[2,1,1], index: 5, kind: output, shape index: {2}]
  %6 = xla_tuple %s3, %s4, %s5
  %s7 = sld [smem:[#allocation0]]
  $region109: #{tpu_custom_call.1} parent=0
    _
  %s9 = ssub.s32 1, %s7
  %s10 = scalar_select 0, %s9, %s7
  $region1: #{tpu_custom_call.1} parent=0
    #allocation2 [shape = 'u8[65536]{0}', space=vmem, size = 0x10000, scoped, tag = 'output window, operand 0']
    #allocation3 [shape = 'u8[1024]{0}', space=vmem, size = 0x400, scoped, tag = 'output window, operand 1']
    #allocation4 [shape = 's32[2]{0}', space=sflag, size = 0x8, scoped, tag = 'scoped memory for tpu_custom_call.1']
    %11 = vsyncpa [#allocation4], 0
    %s12 = scalar_lea.sflag [#allocation4], 1
    %13 = vsyncpa %s12, 0
    loop: start=0, step=1, limit=4
    $region2: #{tpu_custom_call.1} parent=1 // loop_pre_header
      _
    $region3: #{tpu_custom_call.1} parent=1 // loop_header
      %s15 = sphi 0, %s19
      %p16 = scmp.ge.s32.totalorder %s15, 4
      %s25 = sphi 0, %s27
      %s28 = sphi 0, %s25
      %s29 = sphi 0, %s28
      %s45 = sphi 0, %s29
      %s49 = sphi 0, %s49
      %s51 = sphi 0, %s49
      %s52 = sphi 0, %s51
      %s66 = sphi 0, %s52
      %s70 = sphi 0, %s70
      %s72 = sphi 0, %s70
      %s73 = sphi 0, %s72
      %s87 = sphi 0, %s73
      %s93 = sphi 0, %s95
      %s96 = sphi 0, %s93
      %s97 = sphi 0, %s96
      %s113 = sphi 0, %s97
      %s119 = sphi 0, %s121
      %s122 = sphi 0, %s119
      %s123 = sphi 0, %s122
      %s139 = sphi 0, %s123
      %s145 = sphi 0, %s147
      %s148 = sphi 0, %s145
      %s149 = sphi 0, %s148
      %s165 = sphi 0, %s149
    $region4: #{tpu_custom_call.1} parent=1 // loop_header_branch
      %18 = sbr.rel (%p16) target = $region8
    $region5: #{tpu_custom_call.1} parent=1 // loop_body
      %s20 = ssub.s32 %s15, 1
      %s21 = ssub.s32 %s15, 2
      %s22 = sadd.s32 %s15, 1
      %s23 = ssub.s32 %s15, %s22
      %p24 = scmp.eq.s32.totalorder %s23, 0
      %s26 = sadd.s32 %s25, 1
      %s27 = scalar_select %p24, %s25, %s26
      %p30 = pneg %p24
      %p31 = scmp.eq.s32.totalorder %s15, 1
      %p32 = por %p30, %p31
      %p33 = scmp.ne.s32.totalorder %s25, %s28
      %p34 = scmp.eq.s32.totalorder %s15, 0
      %p35 = por %p33, %p34
      %p36 = scmp.ne.s32.totalorder %s25, %s28
      %p37 = scmp.eq.s32.totalorder %s20, 1
      %p38 = por %p36, %p37
      %p39 = scmp.ne.s32.totalorder %s28, %s29
      %p40 = scmp.eq.s32.totalorder %s20, 0
      %p41 = por %p39, %p40
      %p42 = scmp.ne.s32.totalorder %s28, %s29
      %p43 = scmp.eq.s32.totalorder %s21, 1
      %p44 = por %p42, %p43
      %p46 = scmp.ne.s32.totalorder %s29, %s45
      %p47 = scmp.eq.s32.totalorder %s21, 0
      %p48 = por %p46, %p47
      %s50 = sadd.s32 %s49, 1
      %p53 = scmp.eq.s32.totalorder %s15, 1
      %p54 = scmp.ne.s32.totalorder %s49, %s51
      %p55 = scmp.eq.s32.totalorder %s15, 0
      %p56 = por %p54, %p55
      %p57 = scmp.ne.s32.totalorder %s49, %s51
      %p58 = scmp.eq.s32.totalorder %s20, 1
      %p59 = por %p57, %p58
      %p60 = scmp.ne.s32.totalorder %s51, %s52
      %p61 = scmp.eq.s32.totalorder %s20, 0
      %p62 = por %p60, %p61
      %p63 = scmp.ne.s32.totalorder %s51, %s52
      %p64 = scmp.eq.s32.totalorder %s21, 1
      %p65 = por %p63, %p64
      %p67 = scmp.ne.s32.totalorder %s52, %s66
      %p68 = scmp.eq.s32.totalorder %s21, 0
      %p69 = por %p67, %p68
      %s71 = sadd.s32 %s70, 1
      %p74 = scmp.eq.s32.totalorder %s15, 1
      %p75 = scmp.ne.s32.totalorder %s70, %s72
      %p76 = scmp.eq.s32.totalorder %s15, 0
      %p77 = por %p75, %p76
      %p78 = scmp.ne.s32.totalorder %s70, %s72
      %p79 = scmp.eq.s32.totalorder %s20, 1
      %p80 = por %p78, %p79
      %p81 = scmp.ne.s32.totalorder %s72, %s73
      %p82 = scmp.eq.s32.totalorder %s20, 0
      %p83 = por %p81, %p82
      %p84 = scmp.ne.s32.totalorder %s72, %s73
      %p85 = scmp.eq.s32.totalorder %s21, 1
      %p86 = por %p84, %p85
      %p88 = scmp.ne.s32.totalorder %s73, %s87
      %p89 = scmp.eq.s32.totalorder %s21, 0
      %p90 = por %p88, %p89
      %s91 = ssub.s32 %s15, %s22
      %p92 = scmp.eq.s32.totalorder %s91, 0
      %s94 = sadd.s32 %s93, 1
      %s95 = scalar_select %p92, %s93, %s94
      %p98 = pneg %p92
      %p99 = scmp.eq.s32.totalorder %s15, 1
      %p100 = por %p98, %p99
      %p101 = scmp.ne.s32.totalorder %s93, %s96
      %p102 = scmp.eq.s32.totalorder %s15, 0
      %p103 = por %p101, %p102
      %p104 = scmp.ne.s32.totalorder %s93, %s96
      %p105 = scmp.eq.s32.totalorder %s20, 1
      %p106 = por %p104, %p105
      %p107 = scmp.ne.s32.totalorder %s96, %s97
      %p108 = scmp.eq.s32.totalorder %s20, 0
      %p109 = por %p107, %p108
      %p110 = scmp.ne.s32.totalorder %s96, %s97
      %p111 = scmp.eq.s32.totalorder %s21, 1
      %p112 = por %p110, %p111
      %p114 = scmp.ne.s32.totalorder %s97, %s113
      %p115 = scmp.eq.s32.totalorder %s21, 0
      %p116 = por %p114, %p115
      %s117 = ssub.s32 %s15, %s22
      %p118 = scmp.eq.s32.totalorder %s117, 0
      %s120 = sadd.s32 %s119, 1
      %s121 = scalar_select %p118, %s119, %s120
      %p124 = pneg %p118
      %p125 = scmp.eq.s32.totalorder %s15, 1
      %p126 = por %p124, %p125
      %p127 = scmp.ne.s32.totalorder %s119, %s122
      %p128 = scmp.eq.s32.totalorder %s15, 0
      %p129 = por %p127, %p128
      %p130 = scmp.ne.s32.totalorder %s119, %s122
      %p131 = scmp.eq.s32.totalorder %s20, 1
      %p132 = por %p130, %p131
      %p133 = scmp.ne.s32.totalorder %s122, %s123
      %p134 = scmp.eq.s32.totalorder %s20, 0
      %p135 = por %p133, %p134
      %p136 = scmp.ne.s32.totalorder %s122, %s123
      %p137 = scmp.eq.s32.totalorder %s21, 1
      %p138 = por %p136, %p137
      %p140 = scmp.ne.s32.totalorder %s123, %s139
      %p141 = scmp.eq.s32.totalorder %s21, 0
      %p142 = por %p140, %p141
      %s143 = ssub.s32 %s15, %s22
      %p144 = scmp.eq.s32.totalorder %s143, 0
      %s146 = sadd.s32 %s145, 1
      %s147 = scalar_select %p144, %s145, %s146
      %p150 = pneg %p144
      %p151 = scmp.eq.s32.totalorder %s15, 1
      %p152 = por %p150, %p151
      %p153 = scmp.ne.s32.totalorder %s145, %s148
      %p154 = scmp.eq.s32.totalorder %s15, 0
      %p155 = por %p153, %p154
      %p156 = scmp.ne.s32.totalorder %s145, %s148
      %p157 = scmp.eq.s32.totalorder %s20, 1
      %p158 = por %p156, %p157
      %p159 = scmp.ne.s32.totalorder %s148, %s149
      %p160 = scmp.eq.s32.totalorder %s20, 0
      %p161 = por %p159, %p160
      %p162 = scmp.ne.s32.totalorder %s148, %s149
      %p163 = scmp.eq.s32.totalorder %s21, 1
      %p164 = por %p162, %p163
      %p166 = scmp.ne.s32.totalorder %s149, %s165
      %p167 = scmp.eq.s32.totalorder %s21, 0
      %p168 = por %p166, %p167
      %p169 = scmp.le.s32.totalorder 1, %s15
      %p170 = scmp.lt.s32.totalorder %s15, 3
      %p171 = pnand %p169, %p170
      %p172 = pneg %p171
      // Predicated region
      $region9: #{tpu_custom_call.1} parent=5 // pred_check
        _
      $region10: #{tpu_custom_call.1} parent=5 // pred_check_branch
        %174 = sbr.rel (%p171) target = $region12
      $region11: #{tpu_custom_call.1} parent=5 // pred_region
        %s175 = ssub.s32 %s15, 1
        // Predicated region
        $region13: #{tpu_custom_call.1} parent=11 // pred_check
          %p176 = pneg %p62
        $region14: #{tpu_custom_call.1} parent=11 // pred_check_branch
          %178 = sbr.rel (%p176) target = $region16
        $region15: #{tpu_custom_call.1} parent=11 // pred_region
          _
        $region16: #{tpu_custom_call.1} parent=11 // pred_fallthru
          _
        // Predicated region
        $region17: #{tpu_custom_call.1} parent=11 // pred_check
          %p179 = pneg %p83
        $region18: #{tpu_custom_call.1} parent=11 // pred_check_branch
          %181 = sbr.rel (%p179) target = $region20
        $region19: #{tpu_custom_call.1} parent=11 // pred_region
          _
        $region20: #{tpu_custom_call.1} parent=11 // pred_fallthru
          _
      $region12: #{tpu_custom_call.1} parent=5 // pred_fallthru
        _
      %p182 = scmp.lt.s32.totalorder %s15, 2
      // Predicated region
      $region21: #{tpu_custom_call.1} parent=5 // pred_check
        %p183 = pneg %p182
      $region22: #{tpu_custom_call.1} parent=5 // pred_check_branch
        %185 = sbr.rel (%p183) target = $region24
      $region23: #{tpu_custom_call.1} parent=5 // pred_region
        // Predicated region
        $region25: #{tpu_custom_call.1} parent=23 // pred_check
          %p186 = pneg %p35
        $region26: #{tpu_custom_call.1} parent=23 // pred_check_branch
          %188 = sbr.rel (%p186) target = $region28
        $region27: #{tpu_custom_call.1} parent=23 // pred_region
          %s189 = smul.u32 8, %s15
          %s190 = ssub.s32 12, %s189
          %p191 = scmp.lt.s32.totalorder %s190, 8
          %s192 = scalar_select %p191, %s190, 8
          %s193 = smul.u32 128, %s192
          %p194 = scmp.lt.s32.totalorder %s189, 11
          %s195 = scalar_select %p194, %s189, 11
          %s196 = smul.addr %s195, 8
          %s197 = scalar_lea.vmem %s0, %s196
          %s198 = smul.u32 8, %s15
          %s199 = ssub.s32 12, %s198
          %p200 = scmp.lt.s32.totalorder %s199, 8
          %s201 = scalar_select %p200, %s199, 8
          %s202 = smul.u32 128, %s201
        $region28: #{tpu_custom_call.1} parent=23 // pred_fallthru
          _
      $region24: #{tpu_custom_call.1} parent=5 // pred_fallthru
        _
      %p203 = scmp.le.s32.totalorder 1, %s15
      %p204 = scmp.lt.s32.totalorder %s15, 3
      %p205 = pnand %p203, %p204
      %p206 = pneg %p205
      // Predicated region
      $region29: #{tpu_custom_call.1} parent=5 // pred_check
        _
      $region30: #{tpu_custom_call.1} parent=5 // pred_check_branch
        %208 = sbr.rel (%p205) target = $region32
      $region31: #{tpu_custom_call.1} parent=5 // pred_region
        %s209 = ssub.s32 %s15, 1
        %s210 = smul.u32 8, %s20
        %s211 = ssub.s32 12, %s210
        %p212 = scmp.lt.s32.totalorder %s211, 8
        %s213 = scalar_select %p212, %s211, 8
        %s214 = smul.u32 128, %s213
        %p215 = scmp.lt.s32.totalorder %s210, 11
        %s216 = scalar_select %p215, %s210, 11
        %s217 = smul.addr %s216, 8
        %s218 = scalar_lea.vmem %s0, %s217
        %p219 = pneg %p41
        %p220 = pneg %p38
        %p221 = pneg %p62
        %p222 = pneg %p59
        %p223 = pneg %p83
        %p224 = pneg %p80
        %p225 = pneg %p109
        %p226 = pneg %p106
        %s227 = sand.u32 %s96, 1
        %s228 = sand.u32 %s96, 1
        %s229 = smul.addr %s228, 64
        %s230 = scalar_lea.vmem [#allocation2], %s229
        %p231 = pneg %p135
        %p232 = pneg %p132
        %s233 = sand.u32 %s122, 1
        %s234 = scalar_lea.sflag [#allocation4], %s233
        %s235 = sand.u32 %s122, 1
        %s236 = scalar_lea.vmem [#allocation3], %s235
        %p237 = pneg %p161
        %p238 = pneg %p158
        %p239 = scmp.lt.s32.totalorder %s20, 1
        %s240 = scalar_select %p239, %s20, 1
        %s241 = scalar_lea.vmem %s5, %s240
        %s242 = smul.u32 8, %s20
        %s243 = ssub.s32 12, %s242
        %p244 = scmp.lt.s32.totalorder %s243, 8
        %s245 = scalar_select %p244, %s243, 8
        %s246 = smul.u32 128, %s245
        %p247 = scmp.lt.s32.totalorder %s242, 11
        %s248 = scalar_select %p247, %s242, 11
        %s249 = smul.addr %s248, 8
        %s250 = scalar_lea.vmem %s0, %s249
        %s251 = smul.u32 8, %s20
        %s252 = ssub.s32 12, %s251
        %p253 = scmp.lt.s32.totalorder %s252, 8
        %s254 = scalar_select %p253, %s252, 8
        %s255 = smul.u32 128, %s254
        %s256 = smul.u32 8, %s20
        %s257 = ssub.s32 12, %s256
        %p258 = scmp.lt.s32.totalorder %s257, 8
        %s259 = scalar_select %p258, %s257, 8
        %s260 = smul.u32 128, %s259
        %p261 = scmp.lt.s32.totalorder %s20, 1
        %s262 = scalar_select %p261, %s20, 1
        %s263 = scalar_lea.vmem %s5, %s262
        %v265 = vld [vmem:[%s250] sm:$0xff]
        %v266 = vld [vmem:[%s250 + $0x8] sm:$0xff]
        %v267 = vld [vmem:[%s250 + $0x10] sm:$0xff]
        %v268 = vld [vmem:[%s250 + $0x18] sm:$0xff]
        %v269 = vld [vmem:[%s250 + $0x20] sm:$0xff]
        %v270 = vld [vmem:[%s250 + $0x28] sm:$0xff]
        %v271 = vld [vmem:[%s250 + $0x30] sm:$0xff]
        %v272 = vld [vmem:[%s250 + $0x38] sm:$0xff]
        %v273 = vld [vmem:[%s1] sm:$0xff]
        %v274 = vld [vmem:[%s1 + $0x8] sm:$0xff]
        %v275 = vld [vmem:[%s1 + $0x10] sm:$0xff]
        %v276 = vld [vmem:[%s1 + $0x18] sm:$0xff]
        %v277 = vld [vmem:[%s1 + $0x20] sm:$0xff]
        %v278 = vld [vmem:[%s1 + $0x28] sm:$0xff]
        %v279 = vld [vmem:[%s1 + $0x30] sm:$0xff]
        %v280 = vld [vmem:[%s1 + $0x38] sm:$0xff]
        %v281 = vld [vmem:[%s1 + $0x40] sm:$0xff]
        %v282 = vld [vmem:[%s1 + $0x48] sm:$0xff]
        %v283 = vld [vmem:[%s1 + $0x50] sm:$0xff]
        %v284 = vld [vmem:[%s1 + $0x58] sm:$0xff]
        %v285 = vld [vmem:[%s1 + $0x60] sm:$0xff]
        %v286 = vld [vmem:[%s1 + $0x68] sm:$0xff]
        %v287 = vld [vmem:[%s1 + $0x70] sm:$0xff]
        %v288 = vld [vmem:[%s1 + $0x78] sm:$0xff]
        %v289 = vld [vmem:[%s1 + $0x80] sm:$0xff]
        %v290 = vld [vmem:[%s1 + $0x88] sm:$0xff]
        %v291 = vld [vmem:[%s1 + $0x90] sm:$0xff]
        %v292 = vld [vmem:[%s1 + $0x98] sm:$0xff]
        %v293 = vld [vmem:[%s1 + $0xa0] sm:$0xff]
        %v294 = vld [vmem:[%s1 + $0xa8] sm:$0xff]
        %v295 = vld [vmem:[%s1 + $0xb0] sm:$0xff]
        %v296 = vld [vmem:[%s1 + $0xb8] sm:$0xff]
        %v297 = vld [vmem:[%s1 + $0xc0] sm:$0xff]
        %v298 = vld [vmem:[%s1 + $0xc8] sm:$0xff]
        %v299 = vld [vmem:[%s1 + $0xd0] sm:$0xff]
        %v300 = vld [vmem:[%s1 + $0xd8] sm:$0xff]
        %v301 = vld [vmem:[%s1 + $0xe0] sm:$0xff]
        %v302 = vld [vmem:[%s1 + $0xe8] sm:$0xff]
        %v303 = vld [vmem:[%s1 + $0xf0] sm:$0xff]
        %v304 = vld [vmem:[%s1 + $0xf8] sm:$0xff]
        %v305 = vld [vmem:[%s2] sm:$0x3]
        %v306 = vpack.c.bf16 %v266, %v265
        %v307 = vpack.c.bf16 %v268, %v267
        %v308 = vpack.c.bf16 %v270, %v269
        %v309 = vpack.c.bf16 %v272, %v271
        %v310 = vpack.c.bf16 %v274, %v273
        %v311 = vpack.c.bf16 %v276, %v275
        %v312 = vpack.c.bf16 %v278, %v277
        %v313 = vpack.c.bf16 %v280, %v279
        %v314 = vpack.c.bf16 %v282, %v281
        %v315 = vpack.c.bf16 %v284, %v283
        %v316 = vpack.c.bf16 %v286, %v285
        %v317 = vpack.c.bf16 %v288, %v287
        %v318 = vpack.c.bf16 %v290, %v289
        %v319 = vpack.c.bf16 %v292, %v291
        %v320 = vpack.c.bf16 %v294, %v293
        %v321 = vpack.c.bf16 %v296, %v295
        %v322 = vpack.c.bf16 %v298, %v297
        %v323 = vpack.c.bf16 %v300, %v299
        %v324 = vpack.c.bf16 %v302, %v301
        %v325 = vpack.c.bf16 %v304, %v303
        %vm326 = vcmask 261120
        %v328 = vsel %vm326, %v306, 0
        %v331 = vsel %vm326, %v307, 0
        %v334 = vsel %vm326, %v308, 0
        %v337 = vsel %vm326, %v309, 0
        %v340 = vsel %vm326, %v310, 0
        %v343 = vsel %vm326, %v311, 0
        %v346 = vsel %vm326, %v312, 0
        %v349 = vsel %vm326, %v313, 0
        %v352 = vsel %vm326, %v314, 0
        %v355 = vsel %vm326, %v315, 0
        %v358 = vsel %vm326, %v316, 0
        %v361 = vsel %vm326, %v317, 0
        %v364 = vsel %vm326, %v318, 0
        %v367 = vsel %vm326, %v319, 0
        %v370 = vsel %vm326, %v320, 0
        %v373 = vsel %vm326, %v321, 0
        %v376 = vsel %vm326, %v322, 0
        %v379 = vsel %vm326, %v323, 0
        %v382 = vsel %vm326, %v324, 0
        %v385 = vsel %vm326, %v325, 0
        %387 = vmatprep.subr.bf16.mxu0 0
        %388 = vmatpush1.bf16.xpose.msra.mxu0 %v361
        %389 = vmatprep.subr.bf16.mxu0 0
        %390 = vmatpush1.bf16.xpose.msra.mxu0 %v358
        %391 = vmatprep.subr.bf16.mxu0 0
        %392 = vmatpush1.bf16.xpose.msra.mxu0 %v355
        %393 = vmatprep.subr.bf16.mxu0 0
        %394 = vmatpush1.bf16.xpose.msra.mxu0 %v352
        %395 = vmatprep.subr.bf16.mxu0 0
        %396 = vmatpush1.bf16.xpose.msra.mxu0 %v349
        %397 = vmatprep.subr.bf16.mxu0 0
        %398 = vmatpush1.bf16.xpose.msra.mxu0 %v346
        %399 = vmatprep.subr.bf16.mxu0 0
        %400 = vmatpush1.bf16.xpose.msra.mxu0 %v343
        %401 = vmatprep.subr.bf16.mxu0 0
        %402 = vmatpush1.bf16.xpose.msra.mxu0 %v340
        %403 = vmatprep.subr.bf16.mxu0 0
        %404 = vmatpush2.bf16.xpose.msra.mxu0 %v385
        %405 = vmatprep.subr.bf16.mxu0 0
        %406 = vmatpush2.bf16.xpose.msra.mxu0 %v382
        %407 = vmatprep.subr.bf16.mxu0 0
        %408 = vmatpush2.bf16.xpose.msra.mxu0 %v379
        %409 = vmatprep.subr.bf16.mxu0 0
        %410 = vmatpush2.bf16.xpose.msra.mxu0 %v376
        %411 = vmatprep.subr.bf16.mxu0 0
        %412 = vmatpush2.bf16.xpose.msra.mxu0 %v373
        %413 = vmatprep.subr.bf16.mxu0 0
        %414 = vmatpush2.bf16.xpose.msra.mxu0 %v370
        %415 = vmatprep.subr.bf16.mxu0 0
        %416 = vmatpush2.bf16.xpose.msra.mxu0 %v367
        %417 = vmatprep.subr.bf16.mxu0 0
        %418 = vmatpush2.bf16.xpose.msra.mxu0 %v364
        %419 = vmatprep.mubr.bf16.mxu0 0
        %420 = vmatmul.mubr.bf16.gmra.mxu0 %v328
        %v421 = vpop.f32.mrf.mxu0
        %v422 = vadd.f32 0.0, %v421
        %v423 = vpop.f32.mrf.mxu0
        %v424 = vadd.f32 0.0, %v423
        %v425 = vpop.f32.mrf.mxu0
        %v426 = vadd.f32 0.0, %v425
        %v427 = vpop.f32.mrf.mxu0
        %v428 = vadd.f32 0.0, %v427
        %429 = vmatprep.mubr.bf16.mxu0 0
        %430 = vmatmul.mubr.bf16.gmra.mxu0 %v331
        %v431 = vpop.f32.mrf.mxu0
        %v432 = vadd.f32 0.0, %v431
        %v433 = vpop.f32.mrf.mxu0
        %v434 = vadd.f32 0.0, %v433
        %v435 = vpop.f32.mrf.mxu0
        %v436 = vadd.f32 0.0, %v435
        %v437 = vpop.f32.mrf.mxu0
        %v438 = vadd.f32 0.0, %v437
        %439 = vmatprep.mubr.bf16.mxu0 0
        %440 = vmatmul.mubr.bf16.gmra.mxu0 %v334
        %v441 = vpop.f32.mrf.mxu0
        %v442 = vadd.f32 0.0, %v441
        %v443 = vpop.f32.mrf.mxu0
        %v444 = vadd.f32 0.0, %v443
        %v445 = vpop.f32.mrf.mxu0
        %v446 = vadd.f32 0.0, %v445
        %v447 = vpop.f32.mrf.mxu0
        %v448 = vadd.f32 0.0, %v447
        %449 = vmatprep.mubr.bf16.mxu0 0
        %450 = vmatmul.mubr.bf16.gmra.mxu0 %v337
        %v451 = vpop.f32.mrf.mxu0
        %v452 = vadd.f32 0.0, %v451
        %v453 = vpop.f32.mrf.mxu0
        %v454 = vadd.f32 0.0, %v453
        %v455 = vpop.f32.mrf.mxu0
        %v456 = vadd.f32 0.0, %v455
        %v457 = vpop.f32.mrf.mxu0
        %v458 = vadd.f32 0.0, %v457
        %459 = vdwg.mxu0
        %v461 = vlaneseq
        %v462 = vshrl.u32 %v461, 7
        %v463 = vsub.s32 0, %v462
        %v464 = vrot.slane %v305, %v463
        %v465 = vlaneseq
        %v466 = vshrl.u32 %v465, 7
        %v467 = vsub.s32 1, %v466
        %v468 = vrot.slane %v305, %v467
        %v471 = vsub.f32 %v464, %v422
        %v472 = vsub.f32 %v468, %v424
        %v473 = vsub.f32 %v464, %v426
        %v474 = vsub.f32 %v468, %v428
        %v475 = vsub.f32 %v464, %v432
        %v476 = vsub.f32 %v468, %v434
        %v477 = vsub.f32 %v464, %v436
        %v478 = vsub.f32 %v468, %v438
        %v479 = vsub.f32 %v464, %v442
        %v480 = vsub.f32 %v468, %v444
        %v481 = vsub.f32 %v464, %v446
        %v482 = vsub.f32 %v468, %v448
        %v483 = vsub.f32 %v464, %v452
        %v484 = vsub.f32 %v468, %v454
        %v485 = vsub.f32 %v464, %v456
        %v486 = vsub.f32 %v468, %v458
        %v487 = vlaneseq
        %v488 = vand.u32 %v487, 127
        %v489 = vadd.s32 %v488, 128
        %v490 = vmin.f32 %v471, %v472
        %491 = vmin.xlane.f32.xlu0 %v490
        %v492 = vpop.xlane.xlu0 %491
        %v493 = vmin.f32 %v473, %v474
        %494 = vmin.xlane.f32.xlu0 %v493
        %v495 = vpop.xlane.xlu0 %494
        %v496 = vmin.f32 %v475, %v476
        %497 = vmin.xlane.f32.xlu0 %v496
        %v498 = vpop.xlane.xlu0 %497
        %v499 = vmin.f32 %v477, %v478
        %500 = vmin.xlane.f32.xlu0 %v499
        %v501 = vpop.xlane.xlu0 %500
        %v502 = vmin.f32 %v479, %v480
        %503 = vmin.xlane.f32.xlu0 %v502
        %v504 = vpop.xlane.xlu0 %503
        %v505 = vmin.f32 %v481, %v482
        %506 = vmin.xlane.f32.xlu0 %v505
        %v507 = vpop.xlane.xlu0 %506
        %v508 = vmin.f32 %v483, %v484
        %509 = vmin.xlane.f32.xlu0 %v508
        %v510 = vpop.xlane.xlu0 %509
        %v511 = vmin.f32 %v485, %v486
        %512 = vmin.xlane.f32.xlu0 %v511
        %v513 = vpop.xlane.xlu0 %512
        %vm514 = vcmp.eq.f32.partialorder %v471, %v492
        %vm515 = vcmp.eq.f32.partialorder %v472, %v492
        %vm516 = vcmp.eq.f32.partialorder %v473, %v495
        %vm517 = vcmp.eq.f32.partialorder %v474, %v495
        %vm518 = vcmp.eq.f32.partialorder %v475, %v498
        %vm519 = vcmp.eq.f32.partialorder %v476, %v498
        %vm520 = vcmp.eq.f32.partialorder %v477, %v501
        %vm521 = vcmp.eq.f32.partialorder %v478, %v501
        %vm522 = vcmp.eq.f32.partialorder %v479, %v504
        %vm523 = vcmp.eq.f32.partialorder %v480, %v504
        %vm524 = vcmp.eq.f32.partialorder %v481, %v507
        %vm525 = vcmp.eq.f32.partialorder %v482, %v507
        %vm526 = vcmp.eq.f32.partialorder %v483, %v510
        %vm527 = vcmp.eq.f32.partialorder %v484, %v510
        %vm528 = vcmp.eq.f32.partialorder %v485, %v513
        %vm529 = vcmp.eq.f32.partialorder %v486, %v513
        %v530 = vsel %vm514, %v488, 256
        %v531 = vsel %vm515, %v489, 256
        %v532 = vsel %vm516, %v488, 256
        %v533 = vsel %vm517, %v489, 256
        %v534 = vsel %vm518, %v488, 256
        %v535 = vsel %vm519, %v489, 256
        %v536 = vsel %vm520, %v488, 256
        %v537 = vsel %vm521, %v489, 256
        %v538 = vsel %vm522, %v488, 256
        %v539 = vsel %vm523, %v489, 256
        %v540 = vsel %vm524, %v488, 256
        %v541 = vsel %vm525, %v489, 256
        %v542 = vsel %vm526, %v488, 256
        %v543 = vsel %vm527, %v489, 256
        %v544 = vsel %vm528, %v488, 256
        %v545 = vsel %vm529, %v489, 256
        %vm546 = vcmp.lt.s32.totalorder %v530, %v531
        %v547 = vsel %vm546, %v530, %v531
        %v548 = vand.u32 %v547, 65535
        %v549 = vshra.s32 %v547, 16
        %v550 = vcvt.s32.f32 %v548
        %v551 = vcvt.s32.f32 %v549
        %552 = vmin.xlane.f32.xlu0 %v551
        %v553 = vpop.xlane.xlu0 %552
        %vm554 = vcmp.eq.f32.partialorder %v551, %v553
        %v555 = vsel %vm554, %v550, inf
        %556 = vmin.xlane.f32.xlu0 %v555
        %v557 = vpop.xlane.xlu0 %556
        %v558 = vcvt.f32.s32 %v557
        %v559 = vcvt.f32.s32 %v553
        %v560 = vshll.u32 %v559, 16
        %v561 = vadd.s32 %v560, %v558
        %vm562 = vcmp.lt.s32.totalorder %v532, %v533
        %v563 = vsel %vm562, %v532, %v533
        %v564 = vand.u32 %v563, 65535
        %v565 = vshra.s32 %v563, 16
        %v566 = vcvt.s32.f32 %v564
        %v567 = vcvt.s32.f32 %v565
        %568 = vmin.xlane.f32.xlu0 %v567
        %v569 = vpop.xlane.xlu0 %568
        %vm570 = vcmp.eq.f32.partialorder %v567, %v569
        %v571 = vsel %vm570, %v566, inf
        %572 = vmin.xlane.f32.xlu0 %v571
        %v573 = vpop.xlane.xlu0 %572
        %v574 = vcvt.f32.s32 %v573
        %v575 = vcvt.f32.s32 %v569
        %v576 = vshll.u32 %v575, 16
        %v577 = vadd.s32 %v576, %v574
        %vm578 = vcmp.lt.s32.totalorder %v534, %v535
        %v579 = vsel %vm578, %v534, %v535
        %v580 = vand.u32 %v579, 65535
        %v581 = vshra.s32 %v579, 16
        %v582 = vcvt.s32.f32 %v580
        %v583 = vcvt.s32.f32 %v581
        %584 = vmin.xlane.f32.xlu0 %v583
        %v585 = vpop.xlane.xlu0 %584
        %vm586 = vcmp.eq.f32.partialorder %v583, %v585
        %v587 = vsel %vm586, %v582, inf
        %588 = vmin.xlane.f32.xlu0 %v587
        %v589 = vpop.xlane.xlu0 %588
        %v590 = vcvt.f32.s32 %v589
        %v591 = vcvt.f32.s32 %v585
        %v592 = vshll.u32 %v591, 16
        %v593 = vadd.s32 %v592, %v590
        %vm594 = vcmp.lt.s32.totalorder %v536, %v537
        %v595 = vsel %vm594, %v536, %v537
        %v596 = vand.u32 %v595, 65535
        %v597 = vshra.s32 %v595, 16
        %v598 = vcvt.s32.f32 %v596
        %v599 = vcvt.s32.f32 %v597
        %600 = vmin.xlane.f32.xlu0 %v599
        %v601 = vpop.xlane.xlu0 %600
        %vm602 = vcmp.eq.f32.partialorder %v599, %v601
        %v603 = vsel %vm602, %v598, inf
        %604 = vmin.xlane.f32.xlu0 %v603
        %v605 = vpop.xlane.xlu0 %604
        %v606 = vcvt.f32.s32 %v605
        %v607 = vcvt.f32.s32 %v601
        %v608 = vshll.u32 %v607, 16
        %v609 = vadd.s32 %v608, %v606
        %vm610 = vcmp.lt.s32.totalorder %v538, %v539
        %v611 = vsel %vm610, %v538, %v539
        %v612 = vand.u32 %v611, 65535
        %v613 = vshra.s32 %v611, 16
        %v614 = vcvt.s32.f32 %v612
        %v615 = vcvt.s32.f32 %v613
        %616 = vmin.xlane.f32.xlu0 %v615
        %v617 = vpop.xlane.xlu0 %616
        %vm618 = vcmp.eq.f32.partialorder %v615, %v617
        %v619 = vsel %vm618, %v614, inf
        %620 = vmin.xlane.f32.xlu0 %v619
        %v621 = vpop.xlane.xlu0 %620
        %v622 = vcvt.f32.s32 %v621
        %v623 = vcvt.f32.s32 %v617
        %v624 = vshll.u32 %v623, 16
        %v625 = vadd.s32 %v624, %v622
        %vm626 = vcmp.lt.s32.totalorder %v540, %v541
        %v627 = vsel %vm626, %v540, %v541
        %v628 = vand.u32 %v627, 65535
        %v629 = vshra.s32 %v627, 16
        %v630 = vcvt.s32.f32 %v628
        %v631 = vcvt.s32.f32 %v629
        %632 = vmin.xlane.f32.xlu0 %v631
        %v633 = vpop.xlane.xlu0 %632
        %vm634 = vcmp.eq.f32.partialorder %v631, %v633
        %v635 = vsel %vm634, %v630, inf
        %636 = vmin.xlane.f32.xlu0 %v635
        %v637 = vpop.xlane.xlu0 %636
        %v638 = vcvt.f32.s32 %v637
        %v639 = vcvt.f32.s32 %v633
        %v640 = vshll.u32 %v639, 16
        %v641 = vadd.s32 %v640, %v638
        %vm642 = vcmp.lt.s32.totalorder %v542, %v543
        %v643 = vsel %vm642, %v542, %v543
        %v644 = vand.u32 %v643, 65535
        %v645 = vshra.s32 %v643, 16
        %v646 = vcvt.s32.f32 %v644
        %v647 = vcvt.s32.f32 %v645
        %648 = vmin.xlane.f32.xlu0 %v647
        %v649 = vpop.xlane.xlu0 %648
        %vm650 = vcmp.eq.f32.partialorder %v647, %v649
        %v651 = vsel %vm650, %v646, inf
        %652 = vmin.xlane.f32.xlu0 %v651
        %v653 = vpop.xlane.xlu0 %652
        %v654 = vcvt.f32.s32 %v653
        %v655 = vcvt.f32.s32 %v649
        %v656 = vshll.u32 %v655, 16
        %v657 = vadd.s32 %v656, %v654
        %vm658 = vcmp.lt.s32.totalorder %v544, %v545
        %v659 = vsel %vm658, %v544, %v545
        %v660 = vand.u32 %v659, 65535
        %v661 = vshra.s32 %v659, 16
        %v662 = vcvt.s32.f32 %v660
        %v663 = vcvt.s32.f32 %v661
        %664 = vmin.xlane.f32.xlu0 %v663
        %v665 = vpop.xlane.xlu0 %664
        %vm666 = vcmp.eq.f32.partialorder %v663, %v665
        %v667 = vsel %vm666, %v662, inf
        %668 = vmin.xlane.f32.xlu0 %v667
        %v669 = vpop.xlane.xlu0 %668
        %v670 = vcvt.f32.s32 %v669
        %v671 = vcvt.f32.s32 %v665
        %v672 = vshll.u32 %v671, 16
        %v673 = vadd.s32 %v672, %v670
        %vm674 = vcmp.lt.s32.totalorder %v561, 255
        %v675 = vsel %vm674, %v561, 255
        %vm676 = vcmp.lt.s32.totalorder %v577, 255
        %v677 = vsel %vm676, %v577, 255
        %vm678 = vcmp.lt.s32.totalorder %v593, 255
        %v679 = vsel %vm678, %v593, 255
        %vm680 = vcmp.lt.s32.totalorder %v609, 255
        %v681 = vsel %vm680, %v609, 255
        %vm682 = vcmp.lt.s32.totalorder %v625, 255
        %v683 = vsel %vm682, %v625, 255
        %vm684 = vcmp.lt.s32.totalorder %v641, 255
        %v685 = vsel %vm684, %v641, 255
        %vm686 = vcmp.lt.s32.totalorder %v657, 255
        %v687 = vsel %vm686, %v657, 255
        %vm688 = vcmp.lt.s32.totalorder %v673, 255
        %v689 = vsel %vm688, %v673, 255
        %vm690 = vcmp.eq.s32.totalorder %v488, %v675
        %vm691 = vcmp.eq.s32.totalorder %v489, %v675
        %vm692 = vcmp.eq.s32.totalorder %v488, %v677
        %vm693 = vcmp.eq.s32.totalorder %v489, %v677
        %vm694 = vcmp.eq.s32.totalorder %v488, %v679
        %vm695 = vcmp.eq.s32.totalorder %v489, %v679
        %vm696 = vcmp.eq.s32.totalorder %v488, %v681
        %vm697 = vcmp.eq.s32.totalorder %v489, %v681
        %vm698 = vcmp.eq.s32.totalorder %v488, %v683
        %vm699 = vcmp.eq.s32.totalorder %v489, %v683
        %vm700 = vcmp.eq.s32.totalorder %v488, %v685
        %vm701 = vcmp.eq.s32.totalorder %v489, %v685
        %vm702 = vcmp.eq.s32.totalorder %v488, %v687
        %vm703 = vcmp.eq.s32.totalorder %v489, %v687
        %vm704 = vcmp.eq.s32.totalorder %v488, %v689
        %vm705 = vcmp.eq.s32.totalorder %v489, %v689
        %v706 = vsel %vm690, 1, 0
        %v707 = vsel %vm691, 1, 0
        %v708 = vsel %vm692, 1, 0
        %v709 = vsel %vm693, 1, 0
        %v710 = vsel %vm694, 1, 0
        %v711 = vsel %vm695, 1, 0
        %v712 = vsel %vm696, 1, 0
        %v713 = vsel %vm697, 1, 0
        %v714 = vsel %vm698, 1, 0
        %v715 = vsel %vm699, 1, 0
        %v716 = vsel %vm700, 1, 0
        %v717 = vsel %vm701, 1, 0
        %v718 = vsel %vm702, 1, 0
        %v719 = vsel %vm703, 1, 0
        %v720 = vsel %vm704, 1, 0
        %v721 = vsel %vm705, 1, 0
        %v722 = vcvt.s32.f32 %v706
        %v723 = vcvt.s32.f32 %v707
        %v724 = vcvt.s32.f32 %v708
        %v725 = vcvt.s32.f32 %v709
        %v726 = vcvt.s32.f32 %v710
        %v727 = vcvt.s32.f32 %v711
        %v728 = vcvt.s32.f32 %v712
        %v729 = vcvt.s32.f32 %v713
        %v730 = vcvt.s32.f32 %v714
        %v731 = vcvt.s32.f32 %v715
        %v732 = vcvt.s32.f32 %v716
        %v733 = vcvt.s32.f32 %v717
        %v734 = vcvt.s32.f32 %v718
        %v735 = vcvt.s32.f32 %v719
        %v736 = vcvt.s32.f32 %v720
        %v737 = vcvt.s32.f32 %v721
        %738 = vmatprep.subr.mxu0 0.0
        %739 = vmatpush1.msra.mxu0 %v288
        %740 = vmatprep.subr.mxu0 0.0
        %741 = vmatpush1.msra.mxu0 %v287
        %742 = vmatprep.subr.mxu0 0.0
        %743 = vmatpush1.msra.mxu0 %v286
        %744 = vmatprep.subr.mxu0 0.0
        %745 = vmatpush1.msra.mxu0 %v285
        %746 = vmatprep.subr.mxu0 0.0
        %747 = vmatpush1.msra.mxu0 %v284
        %748 = vmatprep.subr.mxu0 0.0
        %749 = vmatpush1.msra.mxu0 %v283
        %750 = vmatprep.subr.mxu0 0.0
        %751 = vmatpush1.msra.mxu0 %v282
        %752 = vmatprep.subr.mxu0 0.0
        %753 = vmatpush1.msra.mxu0 %v281
        %754 = vmatprep.subr.mxu0 0.0
        %755 = vmatpush1.msra.mxu0 %v280
        %756 = vmatprep.subr.mxu0 0.0
        %757 = vmatpush1.msra.mxu0 %v279
        %758 = vmatprep.subr.mxu0 0.0
        %759 = vmatpush1.msra.mxu0 %v278
        %760 = vmatprep.subr.mxu0 0.0
        %761 = vmatpush1.msra.mxu0 %v277
        %762 = vmatprep.subr.mxu0 0.0
        %763 = vmatpush1.msra.mxu0 %v276
        %764 = vmatprep.subr.mxu0 0.0
        %765 = vmatpush1.msra.mxu0 %v275
        %766 = vmatprep.subr.mxu0 0.0
        %767 = vmatpush1.msra.mxu0 %v274
        %768 = vmatprep.subr.mxu0 0.0
        %769 = vmatpush1.msra.mxu0 %v273
        %770 = vmatprep.subr.mxu0 0.0
        %771 = vmatpush2.msra.mxu0 %v304
        %772 = vmatprep.subr.mxu0 0.0
        %773 = vmatpush2.msra.mxu0 %v303
        %774 = vmatprep.subr.mxu0 0.0
        %775 = vmatpush2.msra.mxu0 %v302
        %776 = vmatprep.subr.mxu0 0.0
        %777 = vmatpush2.msra.mxu0 %v301
        %778 = vmatprep.subr.mxu0 0.0
        %779 = vmatpush2.msra.mxu0 %v300
        %780 = vmatprep.subr.mxu0 0.0
        %781 = vmatpush2.msra.mxu0 %v299
        %782 = vmatprep.subr.mxu0 0.0
        %783 = vmatpush2.msra.mxu0 %v298
        %784 = vmatprep.subr.mxu0 0.0
        %785 = vmatpush2.msra.mxu0 %v297
        %786 = vmatprep.subr.mxu0 0.0
        %787 = vmatpush2.msra.mxu0 %v296
        %788 = vmatprep.subr.mxu0 0.0
        %789 = vmatpush2.msra.mxu0 %v295
        %790 = vmatprep.subr.mxu0 0.0
        %791 = vmatpush2.msra.mxu0 %v294
        %792 = vmatprep.subr.mxu0 0.0
        %793 = vmatpush2.msra.mxu0 %v293
        %794 = vmatprep.subr.mxu0 0.0
        %795 = vmatpush2.msra.mxu0 %v292
        %796 = vmatprep.subr.mxu0 0.0
        %797 = vmatpush2.msra.mxu0 %v291
        %798 = vmatprep.subr.mxu0 0.0
        %799 = vmatpush2.msra.mxu0 %v290
        %800 = vmatprep.subr.mxu0 0.0
        %801 = vmatpush2.msra.mxu0 %v289
        %802 = vmatprep.mubr.f32.mxu0 %v723
        %803 = vmatmul.mubr.f32.gmra.mxu0 %v722
        %v804 = vpop.f32.mrf.mxu0
        %v805 = vadd.f32 0.0, %v804
        %v806 = vpop.f32.mrf.mxu0
        %807 = vmatprep.mubr.f32.mxu0 %v725
        %808 = vmatmul.mubr.f32.gmra.mxu0 %v724
        %v809 = vpop.f32.mrf.mxu0
        %v810 = vadd.f32 0.0, %v809
        %v811 = vpop.f32.mrf.mxu0
        %812 = vmatprep.mubr.f32.mxu0 %v727
        %813 = vmatmul.mubr.f32.gmra.mxu0 %v726
        %v814 = vpop.f32.mrf.mxu0
        %v815 = vadd.f32 0.0, %v814
        %v816 = vpop.f32.mrf.mxu0
        %817 = vmatprep.mubr.f32.mxu0 %v729
        %818 = vmatmul.mubr.f32.gmra.mxu0 %v728
        %v819 = vpop.f32.mrf.mxu0
        %v820 = vadd.f32 0.0, %v819
        %v821 = vpop.f32.mrf.mxu0
        %822 = vmatprep.mubr.f32.mxu0 %v731
        %823 = vmatmul.mubr.f32.gmra.mxu0 %v730
        %v824 = vpop.f32.mrf.mxu0
        %v825 = vadd.f32 0.0, %v824
        %v826 = vpop.f32.mrf.mxu0
        %827 = vmatprep.mubr.f32.mxu0 %v733
        %828 = vmatmul.mubr.f32.gmra.mxu0 %v732
        %v829 = vpop.f32.mrf.mxu0
        %v830 = vadd.f32 0.0, %v829
        %v831 = vpop.f32.mrf.mxu0
        %832 = vmatprep.mubr.f32.mxu0 %v735
        %833 = vmatmul.mubr.f32.gmra.mxu0 %v734
        %v834 = vpop.f32.mrf.mxu0
        %v835 = vadd.f32 0.0, %v834
        %v836 = vpop.f32.mrf.mxu0
        %837 = vmatprep.mubr.f32.mxu0 %v737
        %838 = vmatmul.mubr.f32.gmra.mxu0 %v736
        %v839 = vpop.f32.mrf.mxu0
        %v840 = vadd.f32 0.0, %v839
        %v841 = vpop.f32.mrf.mxu0
        %842 = vdwg.mxu0
        %843 = vst.msk [vmem:[%s230] sm:$0xff] %vm326, %v805
        %844 = vst.msk [vmem:[%s230 + $0x8] sm:$0xff] %vm326, %v810
        %845 = vst.msk [vmem:[%s230 + $0x10] sm:$0xff] %vm326, %v815
        %846 = vst.msk [vmem:[%s230 + $0x18] sm:$0xff] %vm326, %v820
        %847 = vst.msk [vmem:[%s230 + $0x20] sm:$0xff] %vm326, %v825
        %848 = vst.msk [vmem:[%s230 + $0x28] sm:$0xff] %vm326, %v830
        %849 = vst.msk [vmem:[%s230 + $0x30] sm:$0xff] %vm326, %v835
        %850 = vst.msk [vmem:[%s230 + $0x38] sm:$0xff] %vm326, %v840
        %v851 = vlaneseq
        %v852 = vshrl.u32 %v851, 7
        %v853 = vsub.s32 %v488, %v852
        %v854 = vrot.slane %v675, %v853
        %v855 = vadd.s32 %v488, 4294967288
        %v856 = vlaneseq
        %v857 = vshrl.u32 %v856, 7
        %v858 = vsub.s32 %v855, %v857
        %v859 = vrot.slane %v677, %v858
        %vm860 = vcmask 130112
        %v861 = vsel %vm860, %v859, %v854
        %v862 = vadd.s32 %v488, 4294967280
        %v863 = vlaneseq
        %v864 = vshrl.u32 %v863, 7
        %v865 = vsub.s32 %v862, %v864
        %v866 = vrot.slane %v679, %v865
        %vm867 = vcmask 195712
        %v868 = vsel %vm867, %v866, %v861
        %v869 = vadd.s32 %v488, 4294967272
        %v870 = vlaneseq
        %v871 = vshrl.u32 %v870, 7
        %v872 = vsub.s32 %v869, %v871
        %v873 = vrot.slane %v681, %v872
        %vm874 = vcmask 261312
        %v875 = vsel %vm874, %v873, %v868
        %v876 = vadd.s32 %v488, 4294967264
        %v877 = vlaneseq
        %v878 = vshrl.u32 %v877, 7
        %v879 = vsub.s32 %v876, %v878
        %v880 = vrot.slane %v683, %v879
        %vm881 = vcmask 326912
        %v882 = vsel %vm881, %v880, %v875
        %v883 = vadd.s32 %v488, 4294967256
        %v884 = vlaneseq
        %v885 = vshrl.u32 %v884, 7
        %v886 = vsub.s32 %v883, %v885
        %v887 = vrot.slane %v685, %v886
        %vm888 = vcmask 392512
        %v889 = vsel %vm888, %v887, %v882
        %v890 = vadd.s32 %v488, 4294967248
        %v891 = vlaneseq
        %v892 = vshrl.u32 %v891, 7
        %v893 = vsub.s32 %v890, %v892
        %v894 = vrot.slane %v687, %v893
        %vm895 = vcmask 458112
        %v896 = vsel %vm895, %v894, %v889
        %v897 = vadd.s32 %v488, 4294967240
        %v898 = vlaneseq
        %v899 = vshrl.u32 %v898, 7
        %v900 = vsub.s32 %v897, %v899
        %v901 = vrot.slane %v689, %v900
        %vm902 = vcmask 523712
        %v903 = vsel %vm902, %v901, %v896
        %vm904 = vcmask 516096
        %905 = vst.msk [vmem:[%s236] sm:$0x1] %vm904, %v903
        %s906 = smul.u32 %s20, 64
        %v907 = vlaneseq
        %v908 = vshrl.u32 %v907, 7
        %v909 = vadd.s32 %v908, 8
        %v910 = vadd.s32 %v908, 16
        %v911 = vadd.s32 %v908, 24
        %v912 = vadd.s32 %v908, 32
        %v913 = vadd.s32 %v908, 40
        %v914 = vadd.s32 %v908, 48
        %v915 = vadd.s32 %v908, 56
        %v916 = vstv %s906
        %v917 = vadd.s32 %v916, %v908
        %v918 = vadd.s32 %v916, %v909
        %v919 = vadd.s32 %v916, %v910
        %v920 = vadd.s32 %v916, %v911
        %v921 = vadd.s32 %v916, %v912
        %v922 = vadd.s32 %v916, %v913
        %v923 = vadd.s32 %v916, %v914
        %v924 = vadd.s32 %v916, %v915
        %vm925 = vcmp.lt.s32.totalorder %v917, 96
        %vm926 = vcmp.lt.s32.totalorder %v918, 96
        %vm927 = vcmp.lt.s32.totalorder %v919, 96
        %vm928 = vcmp.lt.s32.totalorder %v920, 96
        %vm929 = vcmp.lt.s32.totalorder %v921, 96
        %vm930 = vcmp.lt.s32.totalorder %v922, 96
        %vm931 = vcmp.lt.s32.totalorder %v923, 96
        %vm932 = vcmp.lt.s32.totalorder %v924, 96
        %v933 = vsub.f32 %v805, %v265
        %v934 = vsub.f32 %v810, %v266
        %v935 = vsub.f32 %v815, %v267
        %v936 = vsub.f32 %v820, %v268
        %v937 = vsub.f32 %v825, %v269
        %v938 = vsub.f32 %v830, %v270
        %v939 = vsub.f32 %v835, %v271
        %v940 = vsub.f32 %v840, %v272
        %v941 = vsel %vm925, 1, 0
        %v942 = vsel %vm926, 1, 0
        %v943 = vsel %vm927, 1, 0
        %v944 = vsel %vm928, 1, 0
        %v945 = vsel %vm929, 1, 0
        %v946 = vsel %vm930, 1, 0
        %v947 = vsel %vm931, 1, 0
        %v948 = vsel %vm932, 1, 0
        %vm949 = vcmp.eq.s32.totalorder %v941, 1
        %vm950 = vcmp.eq.s32.totalorder %v942, 1
        %vm951 = vcmp.eq.s32.totalorder %v943, 1
        %vm952 = vcmp.eq.s32.totalorder %v944, 1
        %vm953 = vcmp.eq.s32.totalorder %v945, 1
        %vm954 = vcmp.eq.s32.totalorder %v946, 1
        %vm955 = vcmp.eq.s32.totalorder %v947, 1
        %vm956 = vcmp.eq.s32.totalorder %v948, 1
        %v957 = vsel %vm949, %v933, 0.0
        %v958 = vsel %vm950, %v934, 0.0
        %v959 = vsel %vm951, %v935, 0.0
        %v960 = vsel %vm952, %v936, 0.0
        %v961 = vsel %vm953, %v937, 0.0
        %v962 = vsel %vm954, %v938, 0.0
        %v963 = vsel %vm955, %v939, 0.0
        %v964 = vsel %vm956, %v940, 0.0
        %v965 = vmul.f32 %v957, %v957
        %v966 = vmul.f32 %v958, %v958
        %v967 = vmul.f32 %v959, %v959
        %v968 = vmul.f32 %v960, %v960
        %v969 = vmul.f32 %v961, %v961
        %v970 = vmul.f32 %v962, %v962
        %v971 = vmul.f32 %v963, %v963
        %v972 = vmul.f32 %v964, %v964
        %v973 = vsel %vm326, %v965, 0.0
        %v974 = vsel %vm326, %v966, 0.0
        %v975 = vadd.f32 %v973, %v974
        %v976 = vsel %vm326, %v967, 0.0
        %v977 = vadd.f32 %v975, %v976
        %v978 = vsel %vm326, %v968, 0.0
        %v979 = vadd.f32 %v977, %v978
        %v980 = vsel %vm326, %v969, 0.0
        %v981 = vadd.f32 %v979, %v980
        %v982 = vsel %vm326, %v970, 0.0
        %v983 = vadd.f32 %v981, %v982
        %v984 = vsel %vm326, %v971, 0.0
        %v985 = vadd.f32 %v983, %v984
        %v986 = vsel %vm326, %v972, 0.0
        %v987 = vadd.f32 %v985, %v986
        %988 = vadd.xlane.f32.xlu0 %v987
        %v989 = vpop.xlane.xlu0 %988
        %v990 = vrot.slane %v989, 4
        %v991 = vadd.f32 %v989, %v990
        %v992 = vrot.slane %v991, 2
        %v993 = vadd.f32 %v991, %v992
        %v994 = vrot.slane %v993, 1
        %v995 = vadd.f32 %v993, %v994
        %s996 = vtos %v995
        %v997 = vstv %s996
        %vm998 = vcmask 0
        %999 = vst.msk [vmem:[%s263] sm:$0x1] %vm998, %v997
        %s1000 = sand.u32 %s96, 1
        %s1001 = sand.u32 %s96, 1
        %s1002 = smul.addr %s1001, 64
        %s1003 = scalar_lea.vmem [#allocation2], %s1002
        %s1004 = sand.u32 %s122, 1
        %s1005 = scalar_lea.sflag [#allocation4], %s1004
        %s1006 = sand.u32 %s122, 1
        %s1007 = scalar_lea.vmem [#allocation3], %s1006
        %p1008 = scmp.lt.s32.totalorder %s20, 1
        %s1009 = scalar_select %p1008, %s20, 1
        %s1010 = scalar_lea.vmem %s5, %s1009
        // Predicated region
        $region33: #{tpu_custom_call.1} parent=31 // pred_check
          %p1011 = pneg %p106
        $region34: #{tpu_custom_call.1} parent=31 // pred_check_branch
          %1013 = sbr.rel (%p1011) target = $region36
        $region35: #{tpu_custom_call.1} parent=31 // pred_region
          %s1014 = smul.u32 8, %s20
          %s1015 = ssub.s32 12, %s1014
          %p1016 = scmp.lt.s32.totalorder %s1015, 8
          %s1017 = scalar_select %p1016, %s1015, 8
          %s1018 = smul.u32 128, %s1017
          %p1019 = scmp.ne.s32.totalorder 0, %s1018
          %s1020 = smul.addr %s1014, 8
          %s1021 = scalar_lea.vmem %s3, %s1020
          // Predicated region
          $region37: #{tpu_custom_call.1} parent=35 // pred_check
            %p1022 = pneg %p1019
          $region38: #{tpu_custom_call.1} parent=35 // pred_check_branch
            %1024 = sbr.rel (%p1022) target = $region40
          $region39: #{tpu_custom_call.1} parent=35 // pred_region
            // Predicated region
            $region41: #{tpu_custom_call.1} parent=39 // pred_check
              _
            $region42: #{tpu_custom_call.1} parent=39 // pred_check_branch
              %1026 = sbr.rel (0) target = $region44
            $region43: #{tpu_custom_call.1} parent=39 // pred_region
              // Predicated region
              $region63: #{tpu_custom_call.1} parent=43 // pred_check
                _
              $region64: #{tpu_custom_call.1} parent=43 // pred_check_branch
                %1090 = sbr.rel (0) target = $region66
              $region65: #{tpu_custom_call.1} parent=43 // pred_region
                %s1091 = sshrl.u32 %s1017, 3
                // While loop
                $region67: #{tpu_custom_call.1} parent=65 // loop_pre_header
                  _
                $region68: #{tpu_custom_call.1} parent=65 // loop_header
                  %s1093 = sphi 0, %s1095
                  %p1094 = scmp.ge.s32.totalorder %s1093, %s1091
                  %s1098 = sphi 0, %s1119
                  %s1099 = sphi %s1003, %s1122
                  %s1100 = sphi %s1021, %s1123
                $region69: #{tpu_custom_call.1} parent=65 // loop_header_branch
                  %1097 = sbr.rel (%p1094) target = $region73
                $region70: #{tpu_custom_call.1} parent=65 // loop_body
                  %v1101 = vld [vmem:[%s1099] sm:$0xff]
                  %1102 = vst [vmem:[%s1100] sm:$0xff] %v1101
                  %v1103 = vld [vmem:[%s1099 + $0x8] sm:$0xff]
                  %1104 = vst [vmem:[%s1100 + $0x8] sm:$0xff] %v1103
                  %v1105 = vld [vmem:[%s1099 + $0x10] sm:$0xff]
                  %1106 = vst [vmem:[%s1100 + $0x10] sm:$0xff] %v1105
                  %v1107 = vld [vmem:[%s1099 + $0x18] sm:$0xff]
                  %1108 = vst [vmem:[%s1100 + $0x18] sm:$0xff] %v1107
                  %v1109 = vld [vmem:[%s1099 + $0x20] sm:$0xff]
                  %1110 = vst [vmem:[%s1100 + $0x20] sm:$0xff] %v1109
                  %v1111 = vld [vmem:[%s1099 + $0x28] sm:$0xff]
                  %1112 = vst [vmem:[%s1100 + $0x28] sm:$0xff] %v1111
                  %v1113 = vld [vmem:[%s1099 + $0x30] sm:$0xff]
                  %1114 = vst [vmem:[%s1100 + $0x30] sm:$0xff] %v1113
                  %v1115 = vld [vmem:[%s1099 + $0x38] sm:$0xff]
                  %1116 = vst [vmem:[%s1100 + $0x38] sm:$0xff] %v1115
                  %s1117 = sadd.s32 1, %s1098
                  %p1118 = scmp.ge.s32.totalorder %s1117, %s1091
                  %s1119 = scalar_select %p1118, 0, %s1117
                  %s1120 = smul.u32 %s1119, 64
                  %s1121 = smul.u32 %s1119, 64
                  %s1122 = scalar_lea.vmem %s1003, %s1120 [#allocation2]
                  %s1123 = scalar_lea.vmem %s1021, %s1121
                $region71: #{tpu_custom_call.1} parent=65 // loop_footer
                  %s1095 = sadd.s32 %s1093, 1
                $region72: #{tpu_custom_call.1} parent=65 // loop_footer_branch
                  %1092 = sbr.rel target = $region68
                $region73: #{tpu_custom_call.1} parent=65 // loop_exit
                  _
                %s1124 = sshrl.u32 %s1017, 3
                %s1125 = sand.u32 %s1017, 7
                %s1126 = smul.u32 %s1124, 8
                %s1127 = smul.u32 8, %s1126
                %s1128 = scalar_lea.vmem %s1003, %s1127 [#allocation2]
                %s1129 = smul.u32 8, %s1126
                %s1130 = scalar_lea.vmem %s1021, %s1129
                // While loop
                $region74: #{tpu_custom_call.1} parent=65 // loop_pre_header
                  _
                $region75: #{tpu_custom_call.1} parent=65 // loop_header
                  %s1132 = sphi 0, %s1134
                  %p1133 = scmp.ge.s32.totalorder %s1132, %s1125
                  %s1137 = sphi 0, %s1144
                  %s1138 = sphi %s1128, %s1147
                  %s1139 = sphi %s1130, %s1148
                $region76: #{tpu_custom_call.1} parent=65 // loop_header_branch
                  %1136 = sbr.rel (%p1133) target = $region80
                $region77: #{tpu_custom_call.1} parent=65 // loop_body
                  %v1140 = vld [vmem:[%s1138] sm:$0xff]
                  %1141 = vst [vmem:[%s1139] sm:$0xff] %v1140
                  %s1142 = sadd.s32 1, %s1137
                  %p1143 = scmp.ge.s32.totalorder %s1142, %s1125
                  %s1144 = scalar_select %p1143, 0, %s1142
                  %s1145 = smul.u32 %s1144, 8
                  %s1146 = smul.u32 %s1144, 8
                  %s1147 = scalar_lea.vmem %s1128, %s1145 [#allocation2]
                  %s1148 = scalar_lea.vmem %s1130, %s1146
                $region78: #{tpu_custom_call.1} parent=65 // loop_footer
                  %s1134 = sadd.s32 %s1132, 1
                $region79: #{tpu_custom_call.1} parent=65 // loop_footer_branch
                  %1131 = sbr.rel target = $region75
                $region80: #{tpu_custom_call.1} parent=65 // loop_exit
                  _
              $region66: #{tpu_custom_call.1} parent=43 // pred_fallthru
                _
              // Predicated region
              $region81: #{tpu_custom_call.1} parent=43 // pred_check
                _
              $region82: #{tpu_custom_call.1} parent=43 // pred_check_branch
                %1150 = sbr.rel target = $region84
              $region83: #{tpu_custom_call.1} parent=43 // pred_region
                _
              $region84: #{tpu_custom_call.1} parent=43 // pred_fallthru
                _
            $region44: #{tpu_custom_call.1} parent=39 // pred_fallthru
              _
            // Predicated region
            $region45: #{tpu_custom_call.1} parent=39 // pred_check
              _
            $region46: #{tpu_custom_call.1} parent=39 // pred_check_branch
              %1028 = sbr.rel target = $region48
            $region47: #{tpu_custom_call.1} parent=39 // pred_region
              %s1030 = ssub.s32 256, 1
              %s1031 = sshrl.u32 %s1017, 3
              // While loop
              $region49: #{tpu_custom_call.1} parent=47 // loop_pre_header
                _
              $region50: #{tpu_custom_call.1} parent=47 // loop_header
                %s1033 = sphi 0, %s1035
                %p1034 = scmp.ge.s32.totalorder %s1033, %s1031
                %s1038 = sphi 0, %s1059
                %s1039 = sphi %s1003, %s1062
                %s1040 = sphi %s1021, %s1063
              $region51: #{tpu_custom_call.1} parent=47 // loop_header_branch
                %1037 = sbr.rel (%p1034) target = $region55
              $region52: #{tpu_custom_call.1} parent=47 // loop_body
                %v1041 = vld [vmem:[%s1039] sm:%s1030]
                %1042 = vst [vmem:[%s1040] sm:%s1030] %v1041
                %v1043 = vld [vmem:[%s1039 + $0x8] sm:%s1030]
                %1044 = vst [vmem:[%s1040 + $0x8] sm:%s1030] %v1043
                %v1045 = vld [vmem:[%s1039 + $0x10] sm:%s1030]
                %1046 = vst [vmem:[%s1040 + $0x10] sm:%s1030] %v1045
                %v1047 = vld [vmem:[%s1039 + $0x18] sm:%s1030]
                %1048 = vst [vmem:[%s1040 + $0x18] sm:%s1030] %v1047
                %v1049 = vld [vmem:[%s1039 + $0x20] sm:%s1030]
                %1050 = vst [vmem:[%s1040 + $0x20] sm:%s1030] %v1049
                %v1051 = vld [vmem:[%s1039 + $0x28] sm:%s1030]
                %1052 = vst [vmem:[%s1040 + $0x28] sm:%s1030] %v1051
                %v1053 = vld [vmem:[%s1039 + $0x30] sm:%s1030]
                %1054 = vst [vmem:[%s1040 + $0x30] sm:%s1030] %v1053
                %v1055 = vld [vmem:[%s1039 + $0x38] sm:%s1030]
                %1056 = vst [vmem:[%s1040 + $0x38] sm:%s1030] %v1055
                %s1057 = sadd.s32 1, %s1038
                %p1058 = scmp.ge.s32.totalorder %s1057, %s1031
                %s1059 = scalar_select %p1058, 0, %s1057
                %s1060 = smul.u32 %s1059, 64
                %s1061 = smul.u32 %s1059, 64
                %s1062 = scalar_lea.vmem %s1003, %s1060 [#allocation2]
                %s1063 = scalar_lea.vmem %s1021, %s1061
              $region53: #{tpu_custom_call.1} parent=47 // loop_footer
                %s1035 = sadd.s32 %s1033, 1
              $region54: #{tpu_custom_call.1} parent=47 // loop_footer_branch
                %1032 = sbr.rel target = $region50
              $region55: #{tpu_custom_call.1} parent=47 // loop_exit
                _
              %s1064 = sshrl.u32 %s1017, 3
              %s1065 = sand.u32 %s1017, 7
              %s1066 = smul.u32 %s1064, 8
              %s1067 = smul.u32 8, %s1066
              %s1068 = scalar_lea.vmem %s1003, %s1067 [#allocation2]
              %s1069 = smul.u32 8, %s1066
              %s1070 = scalar_lea.vmem %s1021, %s1069
              // While loop
              $region56: #{tpu_custom_call.1} parent=47 // loop_pre_header
                _
              $region57: #{tpu_custom_call.1} parent=47 // loop_header
                %s1072 = sphi 0, %s1074
                %p1073 = scmp.ge.s32.totalorder %s1072, %s1065
                %s1077 = sphi 0, %s1084
                %s1078 = sphi %s1068, %s1087
                %s1079 = sphi %s1070, %s1088
              $region58: #{tpu_custom_call.1} parent=47 // loop_header_branch
                %1076 = sbr.rel (%p1073) target = $region62
              $region59: #{tpu_custom_call.1} parent=47 // loop_body
                %v1080 = vld [vmem:[%s1078] sm:%s1030]
                %1081 = vst [vmem:[%s1079] sm:%s1030] %v1080
                %s1082 = sadd.s32 1, %s1077
                %p1083 = scmp.ge.s32.totalorder %s1082, %s1065
                %s1084 = scalar_select %p1083, 0, %s1082
                %s1085 = smul.u32 %s1084, 8
                %s1086 = smul.u32 %s1084, 8
                %s1087 = scalar_lea.vmem %s1068, %s1085 [#allocation2]
                %s1088 = scalar_lea.vmem %s1070, %s1086
              $region60: #{tpu_custom_call.1} parent=47 // loop_footer
                %s1074 = sadd.s32 %s1072, 1
              $region61: #{tpu_custom_call.1} parent=47 // loop_footer_branch
                %1071 = sbr.rel target = $region57
              $region62: #{tpu_custom_call.1} parent=47 // loop_exit
                _
            $region48: #{tpu_custom_call.1} parent=39 // pred_fallthru
              _
          $region40: #{tpu_custom_call.1} parent=35 // pred_fallthru
            _
          %1151 = vnop
        $region36: #{tpu_custom_call.1} parent=31 // pred_fallthru
          _
        // Predicated region
        $region85: #{tpu_custom_call.1} parent=31 // pred_check
          %p1152 = pneg %p132
        $region86: #{tpu_custom_call.1} parent=31 // pred_check_branch
          %1154 = sbr.rel (%p1152) target = $region88
        $region87: #{tpu_custom_call.1} parent=31 // pred_region
          %s1156 = ssub.s32 16, 16
          %1157 = vsyncadd %s1005, %s1156
          %s1158 = smul.addr %s20, 16
          %s1159 = scalar_lea.hbm %s4, %s1158
          %s1161 = sshll.u32 %s1007, 4
          %s1162 = int_to_ptr.vmem [resolvable:$true] %s1161
          %1164 = dma.vmem_to_hbm [thread:$0]  %s1162, 16, %s1159, %s1005
        $region88: #{tpu_custom_call.1} parent=31 // pred_fallthru
          _
        // Predicated region
        $region89: #{tpu_custom_call.1} parent=31 // pred_check
          %p1165 = pneg %p158
        $region90: #{tpu_custom_call.1} parent=31 // pred_check_branch
          %1167 = sbr.rel (%p1165) target = $region92
        $region91: #{tpu_custom_call.1} parent=31 // pred_region
          _
        $region92: #{tpu_custom_call.1} parent=31 // pred_fallthru
          _
      $region32: #{tpu_custom_call.1} parent=5 // pred_fallthru
        _
      %p1168 = scmp.le.s32.totalorder 2, %s15
      // Predicated region
      $region93: #{tpu_custom_call.1} parent=5 // pred_check
        %p1169 = pneg %p1168
      $region94: #{tpu_custom_call.1} parent=5 // pred_check_branch
        %1171 = sbr.rel (%p1169) target = $region96
      $region95: #{tpu_custom_call.1} parent=5 // pred_region
        %s1172 = ssub.s32 %s15, 2
        // Predicated region
        $region97: #{tpu_custom_call.1} parent=95 // pred_check
          %p1173 = pneg %p112
        $region98: #{tpu_custom_call.1} parent=95 // pred_check_branch
          %1175 = sbr.rel (%p1173) target = $region100
        $region99: #{tpu_custom_call.1} parent=95 // pred_region
          %s1176 = sand.u32 %s97, 1
          %s1177 = sand.u32 %s97, 1
          %s1178 = smul.addr %s1177, 64
          %s1179 = scalar_lea.vmem [#allocation2], %s1178
        $region100: #{tpu_custom_call.1} parent=95 // pred_fallthru
          _
        // Predicated region
        $region101: #{tpu_custom_call.1} parent=95 // pred_check
          %p1180 = pneg %p138
        $region102: #{tpu_custom_call.1} parent=95 // pred_check_branch
          %1182 = sbr.rel (%p1180) target = $region104
        $region103: #{tpu_custom_call.1} parent=95 // pred_region
          %s1183 = sand.u32 %s123, 1
          %s1184 = scalar_lea.sflag [#allocation4], %s1183
          %s1185 = sand.u32 %s123, 1
          %s1186 = scalar_lea.vmem [#allocation3], %s1185
          %1187 = dma.done %s1184, 16
        $region104: #{tpu_custom_call.1} parent=95 // pred_fallthru
          _
        // Predicated region
        $region105: #{tpu_custom_call.1} parent=95 // pred_check
          %p1188 = pneg %p164
        $region106: #{tpu_custom_call.1} parent=95 // pred_check_branch
          %1190 = sbr.rel (%p1188) target = $region108
        $region107: #{tpu_custom_call.1} parent=95 // pred_region
          %p1191 = scmp.lt.s32.totalorder %s21, 1
          %s1192 = scalar_select %p1191, %s21, 1
          %s1193 = scalar_lea.vmem %s5, %s1192
        $region108: #{tpu_custom_call.1} parent=95 // pred_fallthru
          _
      $region96: #{tpu_custom_call.1} parent=5 // pred_fallthru
        _
    $region6: #{tpu_custom_call.1} parent=1 // loop_footer
      %s19 = sadd.s32 1, %s15
    $region7: #{tpu_custom_call.1} parent=1 // loop_footer_branch
      %14 = sbr.rel target = $region3
    $region8: #{tpu_custom_call.1} parent=1 // loop_exit
      _
    %1194 = vsyncpa [#allocation4], 1
    %s1195 = scalar_lea.sflag [#allocation4], 1
    %1196 = vsyncpa %s1195, 1

</llo_original>
